<compile_context>
chip_gen: v6e
topology: v6e:2x2x1
jax: 0.10.0
libtpu: 0.0.40
codegen_flags: <defaults>
</compile_context>

<pallas_src>
import numpy as np
import jax
import jax.numpy as jnp
from jax.experimental import pallas as pl
from jax.experimental.pallas import tpu as pltpu

HIDDEN = 256
HEAD_PAD = 128          # lane-dense width reserved for each head (mean / log_std)
LOG_STD_MIN = -5.0
LOG_STD_MAX = 2.0


def _round_up(n, m):
    return ((n + m - 1) // m) * m


def _actor_kernel(x_ref,            # (TM, obs_dim)          f32
                  w1_ref, b1_ref,   # (obs_dim, 256) bf16, (1, 256) f32
                  w2_ref, b2_ref,   # (256, 256)     bf16, (1, 256) f32
                  wh_ref, bh_ref,   # (256, 256)     bf16, (1, 256) f32  fused heads
                  out_ref):         # (TM, 256) f32: [:,:128]=mean, [:,128:]=log_std
    # fc1 + relu  (bf16 operands on the MXU, f32 accumulate / bias / relu)
    h = jnp.dot(x_ref[...].astype(jnp.bfloat16), w1_ref[...],
                preferred_element_type=jnp.float32) + b1_ref[...]
    h = jnp.maximum(h, 0.0)

    # fc2 + relu
    h = jnp.dot(h.astype(jnp.bfloat16), w2_ref[...],
                preferred_element_type=jnp.float32) + b2_ref[...]
    h = jnp.maximum(h, 0.0)

    # fused heads: lanes [0,128) = mean (zero-padded), lanes [128,256) = log_std
    head = jnp.dot(h.astype(jnp.bfloat16), wh_ref[...],
                   preferred_element_type=jnp.float32) + bh_ref[...]

    # mean: 128-lane-boundary slice store (unmasked vst)
    out_ref[:, :HEAD_PAD] = head[:, :HEAD_PAD]
    # log_std: tanh on the EUP, affine squash to [LOG_STD_MIN, LOG_STD_MAX]
    ls = jnp.tanh(head[:, HEAD_PAD:])
    out_ref[:, HEAD_PAD:] = (LOG_STD_MIN
                             + 0.5 * (LOG_STD_MAX - LOG_STD_MIN) * (ls + 1.0))


def basic_actor_forward(x, params):
    """x: (B, obs_dim) f32  ->  (mean, log_std), each (B, act_dim) f32."""
    B, obs_dim = x.shape
    act_dim = params["w_mean"].shape[1]
    assert act_dim <= HEAD_PAD

    # bf16 weights, f32 biases.
    w1 = params["w1"].astype(jnp.bfloat16)
    w2 = params["w2"].astype(jnp.bfloat16)
    b1 = params["b1"].astype(jnp.float32)
    b2 = params["b2"].astype(jnp.float32)

    # Fuse fc_mean / fc_logstd into one lane-dense (256, 256) weight slab.
    w_head = jnp.zeros((HIDDEN, 2 * HEAD_PAD), jnp.float32)
    w_head = w_head.at[:, :act_dim].set(params["w_mean"])
    w_head = w_head.at[:, HEAD_PAD:HEAD_PAD + act_dim].set(params["w_logstd"])
    w_head = w_head.astype(jnp.bfloat16)
    b_head = jnp.zeros((1, 2 * HEAD_PAD), jnp.float32)
    b_head = b_head.at[:, :act_dim].set(params["b_mean"])
    b_head = b_head.at[:, HEAD_PAD:HEAD_PAD + act_dim].set(params["b_logstd"])

    # Batch tiling: TM=256 at training batch sizes (fills MXU rows, <1 MB of
    # f32 activations per step -> safe on v7x's 64 MiB VMEM); small batches run
    # as a single sublane-aligned tile.
    tm = 256 if B >= 256 else _round_up(max(B, 8), 8)
    b_pad = _round_up(B, tm)
    x_p = x.astype(jnp.float32)
    if b_pad != B:
        x_p = jnp.pad(x_p, ((0, b_pad - B), (0, 0)))
    grid = (b_pad // tm,)

    const = lambda i: (0, 0)
    flops = 2 * b_pad * (obs_dim * HIDDEN + HIDDEN * HIDDEN + HIDDEN * 2 * HEAD_PAD)
    bytes_accessed = (x_p.size * 4
                      + (w1.size + w2.size + w_head.size) * 2
                      + (b1.size + b2.size + b_head.size) * 4
                      + b_pad * 2 * HEAD_PAD * 4)

    out = pl.pallas_call(
        _actor_kernel,
        out_shape=jax.ShapeDtypeStruct((b_pad, 2 * HEAD_PAD), jnp.float32),
        grid=grid,
        in_specs=[
            pl.BlockSpec((tm, obs_dim), lambda i: (i, 0)),     # streamed activations
            pl.BlockSpec((obs_dim, HIDDEN), const),            # weights: VMEM-resident
            pl.BlockSpec((1, HIDDEN), const),
            pl.BlockSpec((HIDDEN, HIDDEN), const),
            pl.BlockSpec((1, HIDDEN), const),
            pl.BlockSpec((HIDDEN, 2 * HEAD_PAD), const),
            pl.BlockSpec((1, 2 * HEAD_PAD), const),
        ],
        out_specs=pl.BlockSpec((tm, 2 * HEAD_PAD), lambda i: (i, 0)),
        compiler_params=pltpu.CompilerParams(
            dimension_semantics=("parallel",)),
        cost_estimate=pl.CostEstimate(flops=flops,
                                      transcendentals=b_pad * HEAD_PAD,
                                      bytes_accessed=bytes_accessed),
    )(x_p, w1, b1, w2, b2, w_head, b_head)

    mean = out[:B, :act_dim]
    log_std = out[:B, HEAD_PAD:HEAD_PAD + act_dim]
    return mean, log_std


def init_params(key, obs_dim, act_dim):
    """Deterministic init mimicking PyTorch's default Linear init (U(-k, k), k=1/sqrt(fan_in))."""
    def linear(key, fan_in, fan_out):
        k = 1.0 / np.sqrt(fan_in)
        kw, kb = jax.random.split(key)
        w = jax.random.uniform(kw, (fan_in, fan_out), jnp.float32, -k, k)
        b = jax.random.uniform(kb, (1, fan_out), jnp.float32, -k, k)
        return w, b

    k1, k2, k3, k4 = jax.random.split(key, 4)
    w1, b1 = linear(k1, obs_dim, HIDDEN)
    w2, b2 = linear(k2, HIDDEN, HIDDEN)
    wm, bm = linear(k3, HIDDEN, act_dim)
    wl, bl = linear(k4, HIDDEN, act_dim)
    return {"w1": w1, "b1": b1, "w2": w2, "b2": b2,
            "w_mean": wm, "b_mean": bm, "w_logstd": wl, "b_logstd": bl}


def reference_forward(x, p):
    """Pure-JAX reference of BasicActor.forward using the same bf16 rounding
    of matmul operands the kernel applies (f32 accumulation)."""
    def mm(a, w):
        return jnp.dot(a.astype(jnp.bfloat16).astype(jnp.float32),
                       w.astype(jnp.bfloat16).astype(jnp.float32))
    h = jax.nn.relu(mm(x, p["w1"]) + p["b1"])
    h = jax.nn.relu(mm(h, p["w2"]) + p["b2"])
    mean = mm(h, p["w_mean"]) + p["b_mean"]
    log_std = jnp.tanh(mm(h, p["w_logstd"]) + p["b_logstd"])
    log_std = LOG_STD_MIN + 0.5 * (LOG_STD_MAX - LOG_STD_MIN) * (log_std + 1.0)
    return mean, log_std


if __name__ == "__main__":
    key = jax.random.PRNGKey(0)
    k_x, k_p = jax.random.split(key)

    B, OBS_DIM, ACT_DIM = 8, 24, 8   # small Box obs/action space
    x = jax.random.normal(k_x, (B, OBS_DIM), jnp.float32)
    params = init_params(k_p, OBS_DIM, ACT_DIM)

    mean, log_std = basic_actor_forward(x, params)
    jax.block_until_ready((mean, log_std))

    ref_mean, ref_log_std = reference_forward(x, params)
    np.testing.assert_allclose(np.asarray(mean), np.asarray(ref_mean),
                               rtol=1e-3, atol=1e-3)
    np.testing.assert_allclose(np.asarray(log_std), np.asarray(ref_log_std),
                               rtol=1e-3, atol=1e-3)

    # TODO(synk): get_action() (Normal.rsample / log_prob / action_scale squash)
    # is a sampling utility outside forward() and is not implemented here.
    print("KERNEL_OK")
</pallas_src>

<mosaic_0001>
module attributes {stable_mosaic.version = 11 : i64} {
  func.func @_actor_kernel(%arg0: i32, %arg1: memref<8x24xf32, #tpu.memory_space<vmem>>, %arg2: memref<24x256xbf16, #tpu.memory_space<vmem>>, %arg3: memref<1x256xf32, #tpu.memory_space<vmem>>, %arg4: memref<256x256xbf16, #tpu.memory_space<vmem>>, %arg5: memref<1x256xf32, #tpu.memory_space<vmem>>, %arg6: memref<256x256xbf16, #tpu.memory_space<vmem>>, %arg7: memref<1x256xf32, #tpu.memory_space<vmem>>, %arg8: memref<8x256xf32, #tpu.memory_space<vmem>>) attributes {dimension_semantics = [#tpu.dimension_semantics<parallel>], iteration_bounds = array<i64: 1>, scalar_prefetch = 0 : i64, scratch_operands = 0 : i64, tpu.core_type = #tpu.core_type<tc>, window_params = [{transform_indices = @transform_0, window_bounds = array<i64: 8, 24>}, {pipeline_mode = #tpu.pipeline_mode<synchronous>, transform_indices = @transform_1, window_bounds = array<i64: 24, 256>}, {pipeline_mode = #tpu.pipeline_mode<synchronous>, transform_indices = @transform_2, window_bounds = array<i64: 1, 256>}, {pipeline_mode = #tpu.pipeline_mode<synchronous>, transform_indices = @transform_3, window_bounds = array<i64: 256, 256>}, {pipeline_mode = #tpu.pipeline_mode<synchronous>, transform_indices = @transform_4, window_bounds = array<i64: 1, 256>}, {pipeline_mode = #tpu.pipeline_mode<synchronous>, transform_indices = @transform_5, window_bounds = array<i64: 256, 256>}, {pipeline_mode = #tpu.pipeline_mode<synchronous>, transform_indices = @transform_6, window_bounds = array<i64: 1, 256>}, {transform_indices = @transform_7, window_bounds = array<i64: 8, 256>}]} {
    %c0 = arith.constant 0 : index
    %c0_0 = arith.constant 0 : index
    %0 = vector.load %arg1[%c0, %c0_0] : memref<8x24xf32, #tpu.memory_space<vmem>>, vector<8x24xf32>
    %1 = arith.truncf %0 : vector<8x24xf32> to vector<8x24xbf16>
    %c0_1 = arith.constant 0 : index
    %c0_2 = arith.constant 0 : index
    %2 = vector.load %arg2[%c0_1, %c0_2] : memref<24x256xbf16, #tpu.memory_space<vmem>>, vector<24x256xbf16>
    %cst = arith.constant dense<0.000000e+00> : vector<8x256xf32>
    %3 = tpu.matmul %1, %2, %cst {dimension_numbers = #tpu.dot_dimension_numbers<[1], [0], [0], [1], [0, 0, 1, 1], [], []>} : vector<8x24xbf16>, vector<24x256xbf16>, vector<8x256xf32> -> vector<8x256xf32>
    %c0_3 = arith.constant 0 : index
    %c0_4 = arith.constant 0 : index
    %4 = vector.load %arg3[%c0_3, %c0_4] : memref<1x256xf32, #tpu.memory_space<vmem>>, vector<1x256xf32>
    %5 = vector.broadcast %4 : vector<1x256xf32> to vector<8x256xf32>
    %6 = arith.addf %3, %5 : vector<8x256xf32>
    %cst_5 = arith.constant 0.000000e+00 : f32
    %7 = vector.broadcast %cst_5 : f32 to vector<8x256xf32>
    %8 = arith.maximumf %6, %7 : vector<8x256xf32>
    %9 = arith.truncf %8 : vector<8x256xf32> to vector<8x256xbf16>
    %c0_6 = arith.constant 0 : index
    %c0_7 = arith.constant 0 : index
    %10 = vector.load %arg4[%c0_6, %c0_7] : memref<256x256xbf16, #tpu.memory_space<vmem>>, vector<256x256xbf16>
    %cst_8 = arith.constant dense<0.000000e+00> : vector<8x256xf32>
    %11 = tpu.matmul %9, %10, %cst_8 {dimension_numbers = #tpu.dot_dimension_numbers<[1], [0], [0], [1], [0, 0, 1, 1], [], []>} : vector<8x256xbf16>, vector<256x256xbf16>, vector<8x256xf32> -> vector<8x256xf32>
    %c0_9 = arith.constant 0 : index
    %c0_10 = arith.constant 0 : index
    %12 = vector.load %arg5[%c0_9, %c0_10] : memref<1x256xf32, #tpu.memory_space<vmem>>, vector<1x256xf32>
    %13 = vector.broadcast %12 : vector<1x256xf32> to vector<8x256xf32>
    %14 = arith.addf %11, %13 : vector<8x256xf32>
    %cst_11 = arith.constant 0.000000e+00 : f32
    %15 = vector.broadcast %cst_11 : f32 to vector<8x256xf32>
    %16 = arith.maximumf %14, %15 : vector<8x256xf32>
    %17 = arith.truncf %16 : vector<8x256xf32> to vector<8x256xbf16>
    %c0_12 = arith.constant 0 : index
    %c0_13 = arith.constant 0 : index
    %18 = vector.load %arg6[%c0_12, %c0_13] : memref<256x256xbf16, #tpu.memory_space<vmem>>, vector<256x256xbf16>
    %cst_14 = arith.constant dense<0.000000e+00> : vector<8x256xf32>
    %19 = tpu.matmul %17, %18, %cst_14 {dimension_numbers = #tpu.dot_dimension_numbers<[1], [0], [0], [1], [0, 0, 1, 1], [], []>} : vector<8x256xbf16>, vector<256x256xbf16>, vector<8x256xf32> -> vector<8x256xf32>
    %c0_15 = arith.constant 0 : index
    %c0_16 = arith.constant 0 : index
    %20 = vector.load %arg7[%c0_15, %c0_16] : memref<1x256xf32, #tpu.memory_space<vmem>>, vector<1x256xf32>
    %21 = vector.broadcast %20 : vector<1x256xf32> to vector<8x256xf32>
    %22 = arith.addf %19, %21 : vector<8x256xf32>
    %23 = vector.extract_strided_slice %22 {offsets = [0, 0], sizes = [8, 128], strides = [1, 1]} : vector<8x256xf32> to vector<8x128xf32>
    %c0_17 = arith.constant 0 : index
    %c0_18 = arith.constant 0 : index
    %24 = vector.load %arg8[%c0_17, %c0_18] : memref<8x256xf32, #tpu.memory_space<vmem>>, vector<8x128xf32>
    tpu.vector_store %arg8[%c0_17, %c0_18], %23 {strides = array<i32>} : memref<8x256xf32, #tpu.memory_space<vmem>>, vector<8x128xf32>,
    %25 = vector.extract_strided_slice %22 {offsets = [0, 128], sizes = [8, 128], strides = [1, 1]} : vector<8x256xf32> to vector<8x128xf32>
    %26 = math.tanh %25 : vector<8x128xf32>
    %cst_19 = arith.constant 1.000000e+00 : f32
    %27 = vector.broadcast %cst_19 : f32 to vector<8x128xf32>
    %28 = arith.addf %26, %27 : vector<8x128xf32>
    %cst_20 = arith.constant 3.500000e+00 : f32
    %29 = vector.broadcast %cst_20 : f32 to vector<8x128xf32>
    %30 = arith.mulf %29, %28 : vector<8x128xf32>
    %cst_21 = arith.constant -5.000000e+00 : f32
    %31 = vector.broadcast %cst_21 : f32 to vector<8x128xf32>
    %32 = arith.addf %31, %30 : vector<8x128xf32>
    %c0_22 = arith.constant 0 : index
    %c128 = arith.constant 128 : index
    %33 = vector.load %arg8[%c0_22, %c128] : memref<8x256xf32, #tpu.memory_space<vmem>>, vector<8x128xf32>
    tpu.vector_store %arg8[%c0_22, %c128], %32 {strides = array<i32>} : memref<8x256xf32, #tpu.memory_space<vmem>>, vector<8x128xf32>,
    return
  }
  func.func @transform_0(%arg0: i32) -> (i32, i32) {
    %c0_i32 = arith.constant 0 : i32
    %c0_i32_0 = arith.constant 0 : i32
    return %arg0, %c0_i32 : i32, i32
  }
  func.func @transform_1(%arg0: i32) -> (i32, i32) {
    %c0_i32 = arith.constant 0 : i32
    %c0_i32_0 = arith.constant 0 : i32
    %c0_i32_1 = arith.constant 0 : i32
    return %c0_i32, %c0_i32_0 : i32, i32
  }
  func.func @transform_2(%arg0: i32) -> (i32, i32) {
    %c0_i32 = arith.constant 0 : i32
    %c0_i32_0 = arith.constant 0 : i32
    %c0_i32_1 = arith.constant 0 : i32
    return %c0_i32, %c0_i32_0 : i32, i32
  }
  func.func @transform_3(%arg0: i32) -> (i32, i32) {
    %c0_i32 = arith.constant 0 : i32
    %c0_i32_0 = arith.constant 0 : i32
    %c0_i32_1 = arith.constant 0 : i32
    return %c0_i32, %c0_i32_0 : i32, i32
  }
  func.func @transform_4(%arg0: i32) -> (i32, i32) {
    %c0_i32 = arith.constant 0 : i32
    %c0_i32_0 = arith.constant 0 : i32
    %c0_i32_1 = arith.constant 0 : i32
    return %c0_i32, %c0_i32_0 : i32, i32
  }
  func.func @transform_5(%arg0: i32) -> (i32, i32) {
    %c0_i32 = arith.constant 0 : i32
    %c0_i32_0 = arith.constant 0 : i32
    %c0_i32_1 = arith.constant 0 : i32
    return %c0_i32, %c0_i32_0 : i32, i32
  }
  func.func @transform_6(%arg0: i32) -> (i32, i32) {
    %c0_i32 = arith.constant 0 : i32
    %c0_i32_0 = arith.constant 0 : i32
    %c0_i32_1 = arith.constant 0 : i32
    return %c0_i32, %c0_i32_0 : i32, i32
  }
  func.func @transform_7(%arg0: i32) -> (i32, i32) {
    %c0_i32 = arith.constant 0 : i32
    %c0_i32_0 = arith.constant 0 : i32
    return %arg0, %c0_i32 : i32, i32
  }
}

</mosaic_0001>

<llo_original>
// kernel: tpu_custom_call.1
$region0: #{tpu_custom_call.1}
  #allocation0 [shape = 'u32[]', space=smem, size = 0x4, offset = 0x4, fixed_abs, tag = 'smem constant byte address 0x4 - core index']
  #allocation1 [shape = 'u32[144,128]{1,0:T(1,128)}', space=vmem, size = 0x12000, scoped, tag = 'internal scratch']
  %s0 = inlined_call_operand.hbm [shape: f32[8,24], index: 0, kind: input, shape index: {}]
  %s1 = inlined_call_operand.hbm [shape: bf16[24,256], index: 1, kind: input, shape index: {}]
  %s2 = inlined_call_operand.vmem [shape: f32[1,256], index: 2, kind: input, shape index: {}]
  %s3 = inlined_call_operand.hbm [shape: bf16[256,256], index: 3, kind: input, shape index: {}]
  %s4 = inlined_call_operand.vmem [shape: f32[1,256], index: 4, kind: input, shape index: {}]
  %s5 = inlined_call_operand.hbm [shape: bf16[256,256], index: 5, kind: input, shape index: {}]
  %s6 = inlined_call_operand.vmem [shape: f32[1,256], index: 6, kind: input, shape index: {}]
  %s7 = inlined_call_operand.hbm [shape: f32[8,256], index: 7, kind: output, shape index: {}]
  %s8 = sld [smem:[#allocation0]]
  $region54: #{tpu_custom_call.1} parent=0
    _
  %s10 = ssub.s32 1, %s8
  %s11 = scalar_select 0, %s10, %s8
  $region1: #{tpu_custom_call.1} parent=0
    #allocation2 [shape = 'u8[4096]{0}', space=vmem, size = 0x1000, scoped, tag = 'input window, operand 0, single buffered']
    #allocation3 [shape = 's32[1]{0}', space=sflag, size = 0x4, scoped, tag = 'scoped memory for tpu_custom_call.1']
    #allocation4 [shape = 's32[1]{0}', space=sflag, size = 0x4, scoped, tag = 'scoped memory for tpu_custom_call.1']
    #allocation5 [shape = 'u8[12288]{0}', space=vmem, size = 0x3000, scoped, tag = 'input window, operand 1, single buffered']
    #allocation6 [shape = 's32[1]{0}', space=sflag, size = 0x4, scoped, tag = 'scoped memory for tpu_custom_call.1']
    #allocation7 [shape = 'u8[131072]{0}', space=vmem, size = 0x20000, scoped, tag = 'input window, operand 3, single buffered']
    #allocation8 [shape = 'u8[131072]{0}', space=vmem, size = 0x20000, scoped, tag = 'input window, operand 5, single buffered']
    #allocation9 [shape = 's32[1]{0}', space=sflag, size = 0x4, scoped, tag = 'scoped memory for tpu_custom_call.1']
    #allocation10 [shape = 'u8[8192]{0}', space=vmem, size = 0x2000, scoped, tag = 'output window, operand 0, single buffered']
    %12 = vsyncpa [#allocation3], 0
    %13 = vsyncpa [#allocation6], 0
    %14 = vsyncpa [#allocation9], 0
    %15 = vsyncpa [#allocation4], 0
    // Predicated region
    $region2: #{tpu_custom_call.1} parent=1 // pred_check
      _
    $region3: #{tpu_custom_call.1} parent=1 // pred_check_branch
      %17 = sbr.rel (0) target = $region5
    $region4: #{tpu_custom_call.1} parent=1 // pred_region
      %s19 = ssub.s32 128, 128
      %20 = vsyncadd [#allocation3], %s19
      %s22 = sshll.u32 [#allocation2], 4
      %s23 = int_to_ptr.vmem [resolvable:$true] %s22
      %25 = dma.hbm_to_vmem [thread:$0]  %s0, 128, %s23, [#allocation3]
    $region5: #{tpu_custom_call.1} parent=1 // pred_fallthru
      _
    // Predicated region
    $region6: #{tpu_custom_call.1} parent=1 // pred_check
      _
    $region7: #{tpu_custom_call.1} parent=1 // pred_check_branch
      %27 = sbr.rel (0) target = $region9
    $region8: #{tpu_custom_call.1} parent=1 // pred_region
      %s29 = ssub.s32 384, 384
      %30 = vsyncadd [#allocation6], %s29
      %s31 = sshll.u32 [#allocation5], 4
      %s32 = int_to_ptr.vmem [resolvable:$true] %s31
      %37 = dma.hbm_to_vmem [thread:$0]  %s1, 384, %s32, [#allocation6], 128, 128, 8
    $region9: #{tpu_custom_call.1} parent=1 // pred_fallthru
      _
    // Predicated region
    $region10: #{tpu_custom_call.1} parent=1 // pred_check
      _
    $region11: #{tpu_custom_call.1} parent=1 // pred_check_branch
      %39 = sbr.rel (0) target = $region13
    $region12: #{tpu_custom_call.1} parent=1 // pred_region
      _
    $region13: #{tpu_custom_call.1} parent=1 // pred_fallthru
      _
    // Predicated region
    $region14: #{tpu_custom_call.1} parent=1 // pred_check
      _
    $region15: #{tpu_custom_call.1} parent=1 // pred_check_branch
      %41 = sbr.rel (0) target = $region17
    $region16: #{tpu_custom_call.1} parent=1 // pred_region
      %s43 = ssub.s32 4096, 4096
      %44 = vsyncadd [#allocation6], %s43
      %s45 = sshll.u32 [#allocation7], 4
      %s46 = int_to_ptr.vmem [resolvable:$true] %s45
      %51 = dma.hbm_to_vmem [thread:$0]  %s3, 4096, %s46, [#allocation6], 128, 128, 8
    $region17: #{tpu_custom_call.1} parent=1 // pred_fallthru
      _
    // Predicated region
    $region18: #{tpu_custom_call.1} parent=1 // pred_check
      _
    $region19: #{tpu_custom_call.1} parent=1 // pred_check_branch
      %53 = sbr.rel (0) target = $region21
    $region20: #{tpu_custom_call.1} parent=1 // pred_region
      _
    $region21: #{tpu_custom_call.1} parent=1 // pred_fallthru
      _
    // Predicated region
    $region22: #{tpu_custom_call.1} parent=1 // pred_check
      _
    $region23: #{tpu_custom_call.1} parent=1 // pred_check_branch
      %55 = sbr.rel (0) target = $region25
    $region24: #{tpu_custom_call.1} parent=1 // pred_region
      %s57 = ssub.s32 4096, 4096
      %58 = vsyncadd [#allocation9], %s57
      %s59 = sshll.u32 [#allocation8], 4
      %s60 = int_to_ptr.vmem [resolvable:$true] %s59
      %65 = dma.hbm_to_vmem [thread:$0]  %s5, 4096, %s60, [#allocation9], 128, 128, 8
    $region25: #{tpu_custom_call.1} parent=1 // pred_fallthru
      _
    // Predicated region
    $region26: #{tpu_custom_call.1} parent=1 // pred_check
      _
    $region27: #{tpu_custom_call.1} parent=1 // pred_check_branch
      %67 = sbr.rel (0) target = $region29
    $region28: #{tpu_custom_call.1} parent=1 // pred_region
      _
    $region29: #{tpu_custom_call.1} parent=1 // pred_fallthru
      _
    // Predicated region
    $region30: #{tpu_custom_call.1} parent=1 // pred_check
      _
    $region31: #{tpu_custom_call.1} parent=1 // pred_check_branch
      %69 = sbr.rel (0) target = $region33
    $region32: #{tpu_custom_call.1} parent=1 // pred_region
      %70 = dma.done [#allocation3], 128
    $region33: #{tpu_custom_call.1} parent=1 // pred_fallthru
      _
    // Predicated region
    $region34: #{tpu_custom_call.1} parent=1 // pred_check
      _
    $region35: #{tpu_custom_call.1} parent=1 // pred_check_branch
      %72 = sbr.rel (0) target = $region37
    $region36: #{tpu_custom_call.1} parent=1 // pred_region
      %73 = dma.done [#allocation6], 384
    $region37: #{tpu_custom_call.1} parent=1 // pred_fallthru
      _
    // Predicated region
    $region38: #{tpu_custom_call.1} parent=1 // pred_check
      _
    $region39: #{tpu_custom_call.1} parent=1 // pred_check_branch
      %75 = sbr.rel (0) target = $region41
    $region40: #{tpu_custom_call.1} parent=1 // pred_region
      %76 = dma.done [#allocation6], 4096
    $region41: #{tpu_custom_call.1} parent=1 // pred_fallthru
      _
    // Predicated region
    $region42: #{tpu_custom_call.1} parent=1 // pred_check
      _
    $region43: #{tpu_custom_call.1} parent=1 // pred_check_branch
      %78 = sbr.rel (0) target = $region45
    $region44: #{tpu_custom_call.1} parent=1 // pred_region
      %79 = dma.done [#allocation9], 4096
    $region45: #{tpu_custom_call.1} parent=1 // pred_fallthru
      _
    %v81 = vld [vmem:[#allocation2] sm:$0xff]
    %v82 = vpack.c.bf16 %v81, %v81
    %v83 = vld [vmem:[#allocation5] sm:$0xff]
    %v84 = vld [vmem:[#allocation5 + $0x8] sm:$0xff]
    %v85 = vld [vmem:[#allocation5 + $0x10] sm:$0xff]
    %v86 = vld [vmem:[%s2] sm:$0x3]
    %v88 = vlaneseq
    %v89 = vshrl.u32 %v88, 7
    %v90 = vsub.s32 0, %v89
    %v91 = vrot.slane %v86, %v90
    %v92 = vlaneseq
    %v93 = vshrl.u32 %v92, 7
    %v94 = vsub.s32 1, %v93
    %v95 = vrot.slane %v86, %v94
    %v101 = vunpack.c.l.b16 %v83
    %v102 = vunpack.c.h.b16 %v83
    %v103 = vunpack.c.l.b16 %v84
    %v104 = vunpack.c.h.b16 %v84
    %v105 = vunpack.c.l.b16 %v85
    %v106 = vunpack.c.h.b16 %v85
    %v107 = vpack.c.b16 %v103, %v101
    %v108 = vpack.c.b16 %v104, %v102
    %v109 = vpack.c.b16 %v105, %v105
    %v110 = vpack.c.b16 %v106, %v106
    %vm113 = vcmask 195584
    %v115 = vsel %vm113, %v82, 0
    %vm117 = vcmask 1043456
    %v119 = vsel %vm117, %v109, 0
    %v122 = vsel %vm117, %v110, 0
    %124 = vmatprep.subr.bf16.mxu0 0
    %125 = vmatpush1.bf16.msra.mxu0 0
    %126 = vmatprep.subr.bf16.mxu0 0
    %127 = vmatpush1.bf16.msra.mxu0 0
    %128 = vmatprep.subr.bf16.mxu0 0
    %129 = vmatpush1.bf16.msra.mxu0 0
    %130 = vmatprep.subr.bf16.mxu0 0
    %131 = vmatpush1.bf16.msra.mxu0 0
    %132 = vmatprep.subr.bf16.mxu0 0
    %133 = vmatpush1.bf16.msra.mxu0 0
    %134 = vmatprep.subr.bf16.mxu0 0
    %135 = vmatpush1.bf16.msra.mxu0 0
    %136 = vmatprep.subr.bf16.mxu0 %v122
    %137 = vmatpush1.bf16.msra.mxu0 %v119
    %138 = vmatprep.subr.bf16.mxu0 %v108
    %139 = vmatpush1.bf16.msra.mxu0 %v107
    %140 = vmatprep.subr.bf16.mxu0 0
    %141 = vmatpush2.bf16.msra.mxu0 0
    %142 = vmatprep.subr.bf16.mxu0 0
    %143 = vmatpush2.bf16.msra.mxu0 0
    %144 = vmatprep.subr.bf16.mxu0 0
    %145 = vmatpush2.bf16.msra.mxu0 0
    %146 = vmatprep.subr.bf16.mxu0 0
    %147 = vmatpush2.bf16.msra.mxu0 0
    %148 = vmatprep.subr.bf16.mxu0 0
    %149 = vmatpush2.bf16.msra.mxu0 0
    %150 = vmatprep.subr.bf16.mxu0 0
    %151 = vmatpush2.bf16.msra.mxu0 0
    %152 = vmatprep.subr.bf16.mxu0 0
    %153 = vmatpush2.bf16.msra.mxu0 0
    %154 = vmatprep.subr.bf16.mxu0 0
    %155 = vmatpush2.bf16.msra.mxu0 0
    %156 = vmatprep.mubr.bf16.mxu0 0
    %157 = vmatmul.mubr.bf16.gmra.mxu0 %v115
    %v158 = vpop.f32.mrf.mxu0
    %v159 = vadd.f32 %v91, %v158
    %v160 = vpop.f32.mrf.mxu0
    %v161 = vadd.f32 %v95, %v160
    %v162 = vpop.f32.mrf.mxu0
    %v163 = vpop.f32.mrf.mxu0
    %164 = vdwg.mxu0
    %v165 = vmax.f32 %v159, 0.0
    %v166 = vmax.f32 %v161, 0.0
    %v167 = vpack.c.bf16 %v165, %v165
    %v168 = vpack.c.bf16 %v166, %v166
    %v169 = vld [vmem:[#allocation7] sm:$0xff]
    %v170 = vld [vmem:[#allocation7 + $0x8] sm:$0xff]
    %v171 = vld [vmem:[#allocation7 + $0x10] sm:$0xff]
    %v172 = vld [vmem:[#allocation7 + $0x18] sm:$0xff]
    %v173 = vld [vmem:[#allocation7 + $0x20] sm:$0xff]
    %v174 = vld [vmem:[#allocation7 + $0x28] sm:$0xff]
    %v175 = vld [vmem:[#allocation7 + $0x30] sm:$0xff]
    %v176 = vld [vmem:[#allocation7 + $0x38] sm:$0xff]
    %v177 = vld [vmem:[#allocation7 + $0x40] sm:$0xff]
    %v178 = vld [vmem:[#allocation7 + $0x48] sm:$0xff]
    %v179 = vld [vmem:[#allocation7 + $0x50] sm:$0xff]
    %v180 = vld [vmem:[#allocation7 + $0x58] sm:$0xff]
    %v181 = vld [vmem:[#allocation7 + $0x60] sm:$0xff]
    %v182 = vld [vmem:[#allocation7 + $0x68] sm:$0xff]
    %v183 = vld [vmem:[#allocation7 + $0x70] sm:$0xff]
    %v184 = vld [vmem:[#allocation7 + $0x78] sm:$0xff]
    %v185 = vld [vmem:[#allocation7 + $0x80] sm:$0xff]
    %v186 = vld [vmem:[#allocation7 + $0x88] sm:$0xff]
    %v187 = vld [vmem:[#allocation7 + $0x90] sm:$0xff]
    %v188 = vld [vmem:[#allocation7 + $0x98] sm:$0xff]
    %v189 = vld [vmem:[#allocation7 + $0xa0] sm:$0xff]
    %v190 = vld [vmem:[#allocation7 + $0xa8] sm:$0xff]
    %v191 = vld [vmem:[#allocation7 + $0xb0] sm:$0xff]
    %v192 = vld [vmem:[#allocation7 + $0xb8] sm:$0xff]
    %v193 = vld [vmem:[#allocation7 + $0xc0] sm:$0xff]
    %v194 = vld [vmem:[#allocation7 + $0xc8] sm:$0xff]
    %v195 = vld [vmem:[#allocation7 + $0xd0] sm:$0xff]
    %v196 = vld [vmem:[#allocation7 + $0xd8] sm:$0xff]
    %v197 = vld [vmem:[#allocation7 + $0xe0] sm:$0xff]
    %v198 = vld [vmem:[#allocation7 + $0xe8] sm:$0xff]
    %v199 = vld [vmem:[#allocation7 + $0xf0] sm:$0xff]
    %v200 = vld [vmem:[#allocation7 + $0xf8] sm:$0xff]
    %v201 = vld [vmem:[%s4] sm:$0x3]
    %v203 = vlaneseq
    %v204 = vshrl.u32 %v203, 7
    %v205 = vsub.s32 0, %v204
    %v206 = vrot.slane %v201, %v205
    %v207 = vlaneseq
    %v208 = vshrl.u32 %v207, 7
    %v209 = vsub.s32 1, %v208
    %v210 = vrot.slane %v201, %v209
    %v245 = vunpack.c.l.b16 %v169
    %v246 = vunpack.c.h.b16 %v169
    %v247 = vunpack.c.l.b16 %v170
    %v248 = vunpack.c.h.b16 %v170
    %v249 = vunpack.c.l.b16 %v171
    %v250 = vunpack.c.h.b16 %v171
    %v251 = vunpack.c.l.b16 %v172
    %v252 = vunpack.c.h.b16 %v172
    %v253 = vunpack.c.l.b16 %v173
    %v254 = vunpack.c.h.b16 %v173
    %v255 = vunpack.c.l.b16 %v174
    %v256 = vunpack.c.h.b16 %v174
    %v257 = vunpack.c.l.b16 %v175
    %v258 = vunpack.c.h.b16 %v175
    %v259 = vunpack.c.l.b16 %v176
    %v260 = vunpack.c.h.b16 %v176
    %v261 = vunpack.c.l.b16 %v177
    %v262 = vunpack.c.h.b16 %v177
    %v263 = vunpack.c.l.b16 %v178
    %v264 = vunpack.c.h.b16 %v178
    %v265 = vunpack.c.l.b16 %v179
    %v266 = vunpack.c.h.b16 %v179
    %v267 = vunpack.c.l.b16 %v180
    %v268 = vunpack.c.h.b16 %v180
    %v269 = vunpack.c.l.b16 %v181
    %v270 = vunpack.c.h.b16 %v181
    %v271 = vunpack.c.l.b16 %v182
    %v272 = vunpack.c.h.b16 %v182
    %v273 = vunpack.c.l.b16 %v183
    %v274 = vunpack.c.h.b16 %v183
    %v275 = vunpack.c.l.b16 %v184
    %v276 = vunpack.c.h.b16 %v184
    %v277 = vunpack.c.l.b16 %v185
    %v278 = vunpack.c.h.b16 %v185
    %v279 = vunpack.c.l.b16 %v186
    %v280 = vunpack.c.h.b16 %v186
    %v281 = vunpack.c.l.b16 %v187
    %v282 = vunpack.c.h.b16 %v187
    %v283 = vunpack.c.l.b16 %v188
    %v284 = vunpack.c.h.b16 %v188
    %v285 = vunpack.c.l.b16 %v189
    %v286 = vunpack.c.h.b16 %v189
    %v287 = vunpack.c.l.b16 %v190
    %v288 = vunpack.c.h.b16 %v190
    %v289 = vunpack.c.l.b16 %v191
    %v290 = vunpack.c.h.b16 %v191
    %v291 = vunpack.c.l.b16 %v192
    %v292 = vunpack.c.h.b16 %v192
    %v293 = vunpack.c.l.b16 %v193
    %v294 = vunpack.c.h.b16 %v193
    %v295 = vunpack.c.l.b16 %v194
    %v296 = vunpack.c.h.b16 %v194
    %v297 = vunpack.c.l.b16 %v195
    %v298 = vunpack.c.h.b16 %v195
    %v299 = vunpack.c.l.b16 %v196
    %v300 = vunpack.c.h.b16 %v196
    %v301 = vunpack.c.l.b16 %v197
    %v302 = vunpack.c.h.b16 %v197
    %v303 = vunpack.c.l.b16 %v198
    %v304 = vunpack.c.h.b16 %v198
    %v305 = vunpack.c.l.b16 %v199
    %v306 = vunpack.c.h.b16 %v199
    %v307 = vunpack.c.l.b16 %v200
    %v308 = vunpack.c.h.b16 %v200
    %v309 = vpack.c.b16 %v247, %v245
    %v310 = vpack.c.b16 %v248, %v246
    %v311 = vpack.c.b16 %v251, %v249
    %v312 = vpack.c.b16 %v252, %v250
    %v313 = vpack.c.b16 %v255, %v253
    %v314 = vpack.c.b16 %v256, %v254
    %v315 = vpack.c.b16 %v259, %v257
    %v316 = vpack.c.b16 %v260, %v258
    %v317 = vpack.c.b16 %v263, %v261
    %v318 = vpack.c.b16 %v264, %v262
    %v319 = vpack.c.b16 %v267, %v265
    %v320 = vpack.c.b16 %v268, %v266
    %v321 = vpack.c.b16 %v271, %v269
    %v322 = vpack.c.b16 %v272, %v270
    %v323 = vpack.c.b16 %v275, %v273
    %v324 = vpack.c.b16 %v276, %v274
    %v325 = vpack.c.b16 %v279, %v277
    %v326 = vpack.c.b16 %v280, %v278
    %v327 = vpack.c.b16 %v283, %v281
    %v328 = vpack.c.b16 %v284, %v282
    %v329 = vpack.c.b16 %v287, %v285
    %v330 = vpack.c.b16 %v288, %v286
    %v331 = vpack.c.b16 %v291, %v289
    %v332 = vpack.c.b16 %v292, %v290
    %v333 = vpack.c.b16 %v295, %v293
    %v334 = vpack.c.b16 %v296, %v294
    %v335 = vpack.c.b16 %v299, %v297
    %v336 = vpack.c.b16 %v300, %v298
    %v337 = vpack.c.b16 %v303, %v301
    %v338 = vpack.c.b16 %v304, %v302
    %v339 = vpack.c.b16 %v307, %v305
    %v340 = vpack.c.b16 %v308, %v306
    %373 = vmatprep.subr.bf16.mxu0 %v324
    %374 = vmatpush1.bf16.msra.mxu0 %v323
    %375 = vmatprep.subr.bf16.mxu0 %v322
    %376 = vmatpush1.bf16.msra.mxu0 %v321
    %377 = vmatprep.subr.bf16.mxu0 %v320
    %378 = vmatpush1.bf16.msra.mxu0 %v319
    %379 = vmatprep.subr.bf16.mxu0 %v318
    %380 = vmatpush1.bf16.msra.mxu0 %v317
    %381 = vmatprep.subr.bf16.mxu0 %v316
    %382 = vmatpush1.bf16.msra.mxu0 %v315
    %383 = vmatprep.subr.bf16.mxu0 %v314
    %384 = vmatpush1.bf16.msra.mxu0 %v313
    %385 = vmatprep.subr.bf16.mxu0 %v312
    %386 = vmatpush1.bf16.msra.mxu0 %v311
    %387 = vmatprep.subr.bf16.mxu0 %v310
    %388 = vmatpush1.bf16.msra.mxu0 %v309
    %389 = vmatprep.subr.bf16.mxu0 %v340
    %390 = vmatpush2.bf16.msra.mxu0 %v339
    %391 = vmatprep.subr.bf16.mxu0 %v338
    %392 = vmatpush2.bf16.msra.mxu0 %v337
    %393 = vmatprep.subr.bf16.mxu0 %v336
    %394 = vmatpush2.bf16.msra.mxu0 %v335
    %395 = vmatprep.subr.bf16.mxu0 %v334
    %396 = vmatpush2.bf16.msra.mxu0 %v333
    %397 = vmatprep.subr.bf16.mxu0 %v332
    %398 = vmatpush2.bf16.msra.mxu0 %v331
    %399 = vmatprep.subr.bf16.mxu0 %v330
    %400 = vmatpush2.bf16.msra.mxu0 %v329
    %401 = vmatprep.subr.bf16.mxu0 %v328
    %402 = vmatpush2.bf16.msra.mxu0 %v327
    %403 = vmatprep.subr.bf16.mxu0 %v326
    %404 = vmatpush2.bf16.msra.mxu0 %v325
    %405 = vmatprep.mubr.bf16.mxu0 %v168
    %406 = vmatmul.mubr.bf16.gmra.mxu0 %v167
    %v407 = vpop.f32.mrf.mxu0
    %v408 = vadd.f32 %v206, %v407
    %v409 = vpop.f32.mrf.mxu0
    %v410 = vadd.f32 %v210, %v409
    %v411 = vpop.f32.mrf.mxu0
    %v412 = vpop.f32.mrf.mxu0
    %413 = vdwg.mxu0
    %v414 = vmax.f32 %v408, 0.0
    %v415 = vmax.f32 %v410, 0.0
    %v416 = vpack.c.bf16 %v414, %v414
    %v417 = vpack.c.bf16 %v415, %v415
    %v418 = vld [vmem:[#allocation8] sm:$0xff]
    %v419 = vld [vmem:[#allocation8 + $0x8] sm:$0xff]
    %v420 = vld [vmem:[#allocation8 + $0x10] sm:$0xff]
    %v421 = vld [vmem:[#allocation8 + $0x18] sm:$0xff]
    %v422 = vld [vmem:[#allocation8 + $0x20] sm:$0xff]
    %v423 = vld [vmem:[#allocation8 + $0x28] sm:$0xff]
    %v424 = vld [vmem:[#allocation8 + $0x30] sm:$0xff]
    %v425 = vld [vmem:[#allocation8 + $0x38] sm:$0xff]
    %v426 = vld [vmem:[#allocation8 + $0x40] sm:$0xff]
    %v427 = vld [vmem:[#allocation8 + $0x48] sm:$0xff]
    %v428 = vld [vmem:[#allocation8 + $0x50] sm:$0xff]
    %v429 = vld [vmem:[#allocation8 + $0x58] sm:$0xff]
    %v430 = vld [vmem:[#allocation8 + $0x60] sm:$0xff]
    %v431 = vld [vmem:[#allocation8 + $0x68] sm:$0xff]
    %v432 = vld [vmem:[#allocation8 + $0x70] sm:$0xff]
    %v433 = vld [vmem:[#allocation8 + $0x78] sm:$0xff]
    %v434 = vld [vmem:[#allocation8 + $0x80] sm:$0xff]
    %v435 = vld [vmem:[#allocation8 + $0x88] sm:$0xff]
    %v436 = vld [vmem:[#allocation8 + $0x90] sm:$0xff]
    %v437 = vld [vmem:[#allocation8 + $0x98] sm:$0xff]
    %v438 = vld [vmem:[#allocation8 + $0xa0] sm:$0xff]
    %v439 = vld [vmem:[#allocation8 + $0xa8] sm:$0xff]
    %v440 = vld [vmem:[#allocation8 + $0xb0] sm:$0xff]
    %v441 = vld [vmem:[#allocation8 + $0xb8] sm:$0xff]
    %v442 = vld [vmem:[#allocation8 + $0xc0] sm:$0xff]
    %v443 = vld [vmem:[#allocation8 + $0xc8] sm:$0xff]
    %v444 = vld [vmem:[#allocation8 + $0xd0] sm:$0xff]
    %v445 = vld [vmem:[#allocation8 + $0xd8] sm:$0xff]
    %v446 = vld [vmem:[#allocation8 + $0xe0] sm:$0xff]
    %v447 = vld [vmem:[#allocation8 + $0xe8] sm:$0xff]
    %v448 = vld [vmem:[#allocation8 + $0xf0] sm:$0xff]
    %v449 = vld [vmem:[#allocation8 + $0xf8] sm:$0xff]
    %v450 = vld [vmem:[%s6] sm:$0x3]
    %v452 = vlaneseq
    %v453 = vshrl.u32 %v452, 7
    %v454 = vsub.s32 0, %v453
    %v455 = vrot.slane %v450, %v454
    %v456 = vlaneseq
    %v457 = vshrl.u32 %v456, 7
    %v458 = vsub.s32 1, %v457
    %v459 = vrot.slane %v450, %v458
    %v494 = vunpack.c.l.b16 %v418
    %v495 = vunpack.c.h.b16 %v418
    %v496 = vunpack.c.l.b16 %v419
    %v497 = vunpack.c.h.b16 %v419
    %v498 = vunpack.c.l.b16 %v420
    %v499 = vunpack.c.h.b16 %v420
    %v500 = vunpack.c.l.b16 %v421
    %v501 = vunpack.c.h.b16 %v421
    %v502 = vunpack.c.l.b16 %v422
    %v503 = vunpack.c.h.b16 %v422
    %v504 = vunpack.c.l.b16 %v423
    %v505 = vunpack.c.h.b16 %v423
    %v506 = vunpack.c.l.b16 %v424
    %v507 = vunpack.c.h.b16 %v424
    %v508 = vunpack.c.l.b16 %v425
    %v509 = vunpack.c.h.b16 %v425
    %v510 = vunpack.c.l.b16 %v426
    %v511 = vunpack.c.h.b16 %v426
    %v512 = vunpack.c.l.b16 %v427
    %v513 = vunpack.c.h.b16 %v427
    %v514 = vunpack.c.l.b16 %v428
    %v515 = vunpack.c.h.b16 %v428
    %v516 = vunpack.c.l.b16 %v429
    %v517 = vunpack.c.h.b16 %v429
    %v518 = vunpack.c.l.b16 %v430
    %v519 = vunpack.c.h.b16 %v430
    %v520 = vunpack.c.l.b16 %v431
    %v521 = vunpack.c.h.b16 %v431
    %v522 = vunpack.c.l.b16 %v432
    %v523 = vunpack.c.h.b16 %v432
    %v524 = vunpack.c.l.b16 %v433
    %v525 = vunpack.c.h.b16 %v433
    %v526 = vunpack.c.l.b16 %v434
    %v527 = vunpack.c.h.b16 %v434
    %v528 = vunpack.c.l.b16 %v435
    %v529 = vunpack.c.h.b16 %v435
    %v530 = vunpack.c.l.b16 %v436
    %v531 = vunpack.c.h.b16 %v436
    %v532 = vunpack.c.l.b16 %v437
    %v533 = vunpack.c.h.b16 %v437
    %v534 = vunpack.c.l.b16 %v438
    %v535 = vunpack.c.h.b16 %v438
    %v536 = vunpack.c.l.b16 %v439
    %v537 = vunpack.c.h.b16 %v439
    %v538 = vunpack.c.l.b16 %v440
    %v539 = vunpack.c.h.b16 %v440
    %v540 = vunpack.c.l.b16 %v441
    %v541 = vunpack.c.h.b16 %v441
    %v542 = vunpack.c.l.b16 %v442
    %v543 = vunpack.c.h.b16 %v442
    %v544 = vunpack.c.l.b16 %v443
    %v545 = vunpack.c.h.b16 %v443
    %v546 = vunpack.c.l.b16 %v444
    %v547 = vunpack.c.h.b16 %v444
    %v548 = vunpack.c.l.b16 %v445
    %v549 = vunpack.c.h.b16 %v445
    %v550 = vunpack.c.l.b16 %v446
    %v551 = vunpack.c.h.b16 %v446
    %v552 = vunpack.c.l.b16 %v447
    %v553 = vunpack.c.h.b16 %v447
    %v554 = vunpack.c.l.b16 %v448
    %v555 = vunpack.c.h.b16 %v448
    %v556 = vunpack.c.l.b16 %v449
    %v557 = vunpack.c.h.b16 %v449
    %v558 = vpack.c.b16 %v496, %v494
    %v559 = vpack.c.b16 %v497, %v495
    %v560 = vpack.c.b16 %v500, %v498
    %v561 = vpack.c.b16 %v501, %v499
    %v562 = vpack.c.b16 %v504, %v502
    %v563 = vpack.c.b16 %v505, %v503
    %v564 = vpack.c.b16 %v508, %v506
    %v565 = vpack.c.b16 %v509, %v507
    %v566 = vpack.c.b16 %v512, %v510
    %v567 = vpack.c.b16 %v513, %v511
    %v568 = vpack.c.b16 %v516, %v514
    %v569 = vpack.c.b16 %v517, %v515
    %v570 = vpack.c.b16 %v520, %v518
    %v571 = vpack.c.b16 %v521, %v519
    %v572 = vpack.c.b16 %v524, %v522
    %v573 = vpack.c.b16 %v525, %v523
    %v574 = vpack.c.b16 %v528, %v526
    %v575 = vpack.c.b16 %v529, %v527
    %v576 = vpack.c.b16 %v532, %v530
    %v577 = vpack.c.b16 %v533, %v531
    %v578 = vpack.c.b16 %v536, %v534
    %v579 = vpack.c.b16 %v537, %v535
    %v580 = vpack.c.b16 %v540, %v538
    %v581 = vpack.c.b16 %v541, %v539
    %v582 = vpack.c.b16 %v544, %v542
    %v583 = vpack.c.b16 %v545, %v543
    %v584 = vpack.c.b16 %v548, %v546
    %v585 = vpack.c.b16 %v549, %v547
    %v586 = vpack.c.b16 %v552, %v550
    %v587 = vpack.c.b16 %v553, %v551
    %v588 = vpack.c.b16 %v556, %v554
    %v589 = vpack.c.b16 %v557, %v555
    %622 = vmatprep.subr.bf16.mxu0 %v573
    %623 = vmatpush1.bf16.msra.mxu0 %v572
    %624 = vmatprep.subr.bf16.mxu0 %v571
    %625 = vmatpush1.bf16.msra.mxu0 %v570
    %626 = vmatprep.subr.bf16.mxu0 %v569
    %627 = vmatpush1.bf16.msra.mxu0 %v568
    %628 = vmatprep.subr.bf16.mxu0 %v567
    %629 = vmatpush1.bf16.msra.mxu0 %v566
    %630 = vmatprep.subr.bf16.mxu0 %v565
    %631 = vmatpush1.bf16.msra.mxu0 %v564
    %632 = vmatprep.subr.bf16.mxu0 %v563
    %633 = vmatpush1.bf16.msra.mxu0 %v562
    %634 = vmatprep.subr.bf16.mxu0 %v561
    %635 = vmatpush1.bf16.msra.mxu0 %v560
    %636 = vmatprep.subr.bf16.mxu0 %v559
    %637 = vmatpush1.bf16.msra.mxu0 %v558
    %638 = vmatprep.subr.bf16.mxu0 %v589
    %639 = vmatpush2.bf16.msra.mxu0 %v588
    %640 = vmatprep.subr.bf16.mxu0 %v587
    %641 = vmatpush2.bf16.msra.mxu0 %v586
    %642 = vmatprep.subr.bf16.mxu0 %v585
    %643 = vmatpush2.bf16.msra.mxu0 %v584
    %644 = vmatprep.subr.bf16.mxu0 %v583
    %645 = vmatpush2.bf16.msra.mxu0 %v582
    %646 = vmatprep.subr.bf16.mxu0 %v581
    %647 = vmatpush2.bf16.msra.mxu0 %v580
    %648 = vmatprep.subr.bf16.mxu0 %v579
    %649 = vmatpush2.bf16.msra.mxu0 %v578
    %650 = vmatprep.subr.bf16.mxu0 %v577
    %651 = vmatpush2.bf16.msra.mxu0 %v576
    %652 = vmatprep.subr.bf16.mxu0 %v575
    %653 = vmatpush2.bf16.msra.mxu0 %v574
    %654 = vmatprep.mubr.bf16.mxu0 %v417
    %655 = vmatmul.mubr.bf16.gmra.mxu0 %v416
    %v656 = vpop.f32.mrf.mxu0
    %v657 = vadd.f32 %v455, %v656
    %v658 = vpop.f32.mrf.mxu0
    %v659 = vadd.f32 %v459, %v658
    %v660 = vpop.f32.mrf.mxu0
    %v661 = vpop.f32.mrf.mxu0
    %662 = vdwg.mxu0
    %663 = vst [vmem:[#allocation10] sm:$0xff] %v657
    %v664 = vtanh.pop %v659
    %v665 = vadd.f32 %v664, 1.0
    %v666 = vmul.f32 %v665, 3.5
    %v667 = vadd.f32 %v666, -5.0
    %668 = vst [vmem:[#allocation10 + $0x8] sm:$0xff] %v667
    // Predicated region
    $region46: #{tpu_custom_call.1} parent=1 // pred_check
      _
    $region47: #{tpu_custom_call.1} parent=1 // pred_check_branch
      %670 = sbr.rel (0) target = $region49
    $region48: #{tpu_custom_call.1} parent=1 // pred_region
      %s672 = ssub.s32 256, 256
      %673 = vsyncadd [#allocation4], %s672
      %s675 = sshll.u32 [#allocation10], 4
      %s676 = int_to_ptr.vmem [resolvable:$true] %s675
      %678 = dma.vmem_to_hbm [thread:$0]  %s676, 256, %s7, [#allocation4]
    $region49: #{tpu_custom_call.1} parent=1 // pred_fallthru
      _
    // Predicated region
    $region50: #{tpu_custom_call.1} parent=1 // pred_check
      _
    $region51: #{tpu_custom_call.1} parent=1 // pred_check_branch
      %680 = sbr.rel (0) target = $region53
    $region52: #{tpu_custom_call.1} parent=1 // pred_region
      %681 = dma.done [#allocation4], 256
    $region53: #{tpu_custom_call.1} parent=1 // pred_fallthru
      _
    %682 = vsyncpa [#allocation3], 1
    %683 = vsyncpa [#allocation6], 1
    %684 = vsyncpa [#allocation9], 1
    %685 = vsyncpa [#allocation4], 1

</llo_original>
